<compile_context>
chip_gen: v7x
topology: tpu7x:2x2x1
jax: 0.10.0
libtpu: 0.0.40
codegen_flags: <defaults>
</compile_context>

<pallas_src>
import functools

import jax
import jax.numpy as jnp
from jax.experimental import pallas as pl
from jax.experimental.pallas import tpu as pltpu

_LANE = 128


def _focal_from_ce(ce, alpha, gamma):
    """focal loss from a clamped (>= 0), lane-dense cross-entropy tile."""
    pt = jnp.exp(-ce)
    omp = 1.0 - pt                       # >= 0 because ce >= 0
    if gamma == 2.0:                     # default: cheap square, no pow
        w = omp * omp
    elif gamma == 1.0:
        w = omp
    elif gamma == 0.0:
        w = jnp.ones_like(omp)
    else:
        w = omp ** gamma
    loss = w * ce
    if alpha != 1.0:
        loss = alpha * loss
    return loss


def _make_kernel_classes_on_lanes(alpha, gamma, batch, tb):
    """Layout: logits block [tb, C] (classes on lanes). Used when C >= 128."""
    alpha = float(alpha)
    gamma = float(gamma)

    def kernel(logits_ref, labels_ref, loss_ref, psum_ref):
        logits = logits_ref[...].astype(jnp.float32)        # cast AFTER DMA
        labels = labels_ref[...]                             # [tb, 1] int32
        c = logits.shape[-1]

        # Stable log-sum-exp over classes (lane reduction).
        m = jnp.max(logits, axis=-1, keepdims=True)           # [tb, 1]
        e = jnp.exp(logits - m)                                # [tb, C]
        lse = m + jnp.log(jnp.sum(e, axis=-1, keepdims=True))  # [tb, 1]

        # True-class logit via one-hot select (>= 2-D iota on TPU).
        col = jax.lax.broadcasted_iota(jnp.int32, (tb, c), 1)
        true_logit = jnp.sum(jnp.where(col == labels, logits, 0.0),
                             axis=-1, keepdims=True)           # [tb, 1]

        ce = jnp.maximum(lse - true_logit, 0.0)                # clamp >= 0
        ce = ce.reshape(1, tb)          # lane-dense relayout for the epilogue
        loss = _focal_from_ce(ce, alpha, gamma)                # [1, tb]
        loss_ref[...] = loss

        # Masked per-block partial sum (fused mean/sum).  Padded rows of the
        # ragged final block are excluded here.
        lane = jax.lax.broadcasted_iota(jnp.int32, (1, tb), 1)
        valid = (pl.program_id(0) * tb + lane) < batch
        block_sum = jnp.sum(jnp.where(valid, loss, 0.0))
        psum_ref[...] = jnp.zeros((1, _LANE), jnp.float32) + block_sum

    return kernel


def _make_kernel_batch_on_lanes(alpha, gamma, batch, tb):
    """Layout: logits block [C, tb] (batch on lanes). Used when C < 128."""
    alpha = float(alpha)
    gamma = float(gamma)

    def kernel(logits_ref, labels_ref, loss_ref, psum_ref):
        logits = logits_ref[...].astype(jnp.float32)        # [C, tb]
        labels = labels_ref[...]                             # [1, tb] int32
        c = logits.shape[0]

        # Class reductions run along sublanes; everything stays lane-dense.
        m = jnp.max(logits, axis=0, keepdims=True)             # [1, tb]
        e = jnp.exp(logits - m)                                # [C, tb]
        lse = m + jnp.log(jnp.sum(e, axis=0, keepdims=True))   # [1, tb]

        row = jax.lax.broadcasted_iota(jnp.int32, (c, tb), 0)
        true_logit = jnp.sum(jnp.where(row == labels, logits, 0.0),
                             axis=0, keepdims=True)            # [1, tb]

        ce = jnp.maximum(lse - true_logit, 0.0)                # [1, tb]
        loss = _focal_from_ce(ce, alpha, gamma)
        loss_ref[...] = loss

        lane = jax.lax.broadcasted_iota(jnp.int32, (1, tb), 1)
        valid = (pl.program_id(0) * tb + lane) < batch
        block_sum = jnp.sum(jnp.where(valid, loss, 0.0))
        psum_ref[...] = jnp.zeros((1, _LANE), jnp.float32) + block_sum

    return kernel


def _pick_tile_rows(batch, num_classes, itemsize, max_tile_bytes=8 << 20):
    """Batch rows per grid block.

    * multiple of 128 (lane-aligned output blocks / lane-major input blocks),
      or the full batch when batch <= 128;
    * <= ~8 MiB of logits per block (2x pipeline buffers stay well under the
      explicit 40 MiB VMEM limit on every generation, incl. v7x's 64 MiB);
    * >= 2 blocks whenever batch > 128, so v7x can shard the "parallel" grid
      axis across both TensorCores.
    """
    if batch <= _LANE:
        return batch                                  # single full-extent block
    row_bytes = max(1, num_classes * itemsize)
    budget = max(_LANE, (max_tile_bytes // row_bytes) // _LANE * _LANE)
    half = -(-batch // 2)                             # ceil(batch / 2)
    half = -(-half // _LANE) * _LANE                  # round up; always < batch
    return min(budget, half)


@functools.partial(jax.jit, static_argnames=("alpha", "gamma", "reduction",
                                             "tile_rows"))
def focal_loss(logits, labels, alpha=1.0, gamma=2.0, reduction="mean",
               tile_rows=None):
    """Pallas FocalLoss forward.  logits: [B, C] (any float), labels: [B] int."""
    batch, num_classes = logits.shape
    # No wrapper cast of logits: the kernel casts after the VMEM load, so
    # bf16/f16 logits stream from HBM at their native width.
    labels_i32 = labels.astype(jnp.int32)

    itemsize = jnp.dtype(logits.dtype).itemsize
    tb = tile_rows if tile_rows is not None else _pick_tile_rows(
        batch, num_classes, itemsize)
    num_blocks = pl.cdiv(batch, tb)
    padded_b = num_blocks * tb

    transposed = num_classes < _LANE
    if transposed:
        # Batch on the lane axis: full lane occupancy for small class counts.
        logits_in = logits.T                                   # [C, B]
        labels_in = labels_i32.reshape(1, batch)               # [1, B]
        logits_spec = pl.BlockSpec((num_classes, tb), lambda i: (0, i))
        labels_spec = pl.BlockSpec((1, tb), lambda i: (0, i))
        kernel = _make_kernel_batch_on_lanes(alpha, gamma, batch, tb)
    else:
        logits_in = logits                                     # [B, C]
        labels_in = labels_i32.reshape(batch, 1)               # [B, 1]
        logits_spec = pl.BlockSpec((tb, num_classes), lambda i: (i, 0))
        labels_spec = pl.BlockSpec((tb, 1), lambda i: (i, 0))
        kernel = _make_kernel_classes_on_lanes(alpha, gamma, batch, tb)

    per_example, psums = pl.pallas_call(
        kernel,
        out_shape=(
            jax.ShapeDtypeStruct((1, padded_b), jnp.float32),        # per-ex loss
            jax.ShapeDtypeStruct((1, num_blocks * _LANE), jnp.float32),  # block sums
        ),
        grid=(num_blocks,),
        in_specs=[logits_spec, labels_spec],
        out_specs=(
            pl.BlockSpec((1, tb), lambda i: (0, i)),
            pl.BlockSpec((1, _LANE), lambda i: (0, i)),
        ),
        compiler_params=pltpu.CompilerParams(
            dimension_semantics=("parallel",),
            vmem_limit_bytes=40 << 20),
    )(logits_in, labels_in)

    if reduction in ("mean", "sum"):
        block_sums = psums.reshape(num_blocks, _LANE)[:, 0]
        total = jnp.sum(block_sums)
        if reduction == "mean":
            return total * (1.0 / batch)      # global batch, precomputed recip
        return total
    return per_example[0, :batch]             # reduction == 'none'


def _focal_reference(logits, labels, alpha=1.0, gamma=2.0, reduction="mean"):
    """Pure-JAX reference mirroring the PyTorch FocalLoss module."""
    logp = jax.nn.log_softmax(logits.astype(jnp.float32), axis=-1)
    ce = -jnp.take_along_axis(logp, labels[:, None].astype(jnp.int32),
                              axis=-1)[:, 0]
    pt = jnp.exp(-ce)
    fl = alpha * (1.0 - pt) ** gamma * ce
    if reduction == "mean":
        return jnp.mean(fl)
    if reduction == "sum":
        return jnp.sum(fl)
    return fl


if __name__ == "__main__":
    root = jax.random.PRNGKey(0)

    def check(B, C, dtype, alpha, gamma):
        kl, kb = jax.random.split(jax.random.fold_in(root, B * 1000 + C))
        logits = jax.random.normal(kl, (B, C), dtype=jnp.float32).astype(dtype)
        labels = jax.random.randint(kb, (B,), 0, C, dtype=jnp.int32)
        for reduction in ("mean", "sum", "none"):
            got = jax.block_until_ready(
                focal_loss(logits, labels, alpha=alpha, gamma=gamma,
                           reduction=reduction))
            want = _focal_reference(logits, labels, alpha=alpha, gamma=gamma,
                                    reduction=reduction)
            assert jnp.allclose(got, want, rtol=1e-5, atol=1e-5), (
                B, C, reduction, got, want)

    # Small-C layout (batch on lanes), single full-extent block.
    check(32, 8, jnp.float32, alpha=1.0, gamma=2.0)
    # Small-C layout, 2 grid blocks with a ragged (masked) final block.
    check(300, 8, jnp.float32, alpha=1.0, gamma=2.0)
    # Classes-on-lanes layout (C >= 128): bf16 ingest with in-kernel cast,
    # 2 grid blocks, non-integer gamma exercising the clamped pow path.
    check(200, 160, jnp.bfloat16, alpha=0.25, gamma=1.5)

    print("KERNEL_OK")
</pallas_src>

<mosaic_0001>
module attributes {stable_mosaic.version = 11 : i64} {
  func.func @kernel(%arg0: i32, %arg1: memref<8x32xf32, #tpu.memory_space<vmem>>, %arg2: memref<1x32xi32, #tpu.memory_space<vmem>>, %arg3: memref<1x32xf32, #tpu.memory_space<vmem>>, %arg4: memref<1x128xf32, #tpu.memory_space<vmem>>) attributes {dimension_semantics = [#tpu.dimension_semantics<parallel>], iteration_bounds = array<i64: 1>, scalar_prefetch = 0 : i64, scratch_operands = 0 : i64, tpu.core_type = #tpu.core_type<tc>, window_params = [{transform_indices = @transform_0, window_bounds = array<i64: 8, 32>}, {transform_indices = @transform_1, window_bounds = array<i64: 1, 32>}, {transform_indices = @transform_2, window_bounds = array<i64: 1, 32>}, {transform_indices = @transform_3, window_bounds = array<i64: 1, 128>}]} {
    %c0 = arith.constant 0 : index
    %c0_0 = arith.constant 0 : index
    %0 = vector.load %arg1[%c0, %c0_0] : memref<8x32xf32, #tpu.memory_space<vmem>>, vector<8x32xf32>
    %c0_1 = arith.constant 0 : index
    %c0_2 = arith.constant 0 : index
    %1 = vector.load %arg2[%c0_1, %c0_2] : memref<1x32xi32, #tpu.memory_space<vmem>>, vector<1x32xi32>
    %cst = arith.constant dense<0xFF800000> : vector<32xf32>
    %2 = vector.multi_reduction <maximumf>, %0, %cst [0] : vector<8x32xf32> to vector<32xf32>
    %3 = vector.shape_cast %2 : vector<32xf32> to vector<1x32xf32>
    %4 = vector.broadcast %3 : vector<1x32xf32> to vector<8x32xf32>
    %5 = arith.subf %0, %4 : vector<8x32xf32>
    %6 = math.exp %5 : vector<8x32xf32>
    %cst_3 = arith.constant dense<0.000000e+00> : vector<32xf32>
    %7 = vector.multi_reduction <add>, %6, %cst_3 [0] : vector<8x32xf32> to vector<32xf32>
    %8 = vector.shape_cast %7 : vector<32xf32> to vector<1x32xf32>
    %9 = math.log %8 : vector<1x32xf32>
    %10 = arith.addf %3, %9 : vector<1x32xf32>
    %11 = tpu.iota {dimensions = array<i32: 0>} : vector<8x32xi32>
    %12 = vector.broadcast %1 : vector<1x32xi32> to vector<8x32xi32>
    %13 = arith.cmpi eq, %11, %12 : vector<8x32xi32>
    %cst_4 = arith.constant 0.000000e+00 : f32
    %14 = vector.broadcast %cst_4 : f32 to vector<8x32xf32>
    %15 = arith.select %13, %0, %14 : vector<8x32xi1>, vector<8x32xf32>
    %cst_5 = arith.constant dense<0.000000e+00> : vector<32xf32>
    %16 = vector.multi_reduction <add>, %15, %cst_5 [0] : vector<8x32xf32> to vector<32xf32>
    %17 = vector.shape_cast %16 : vector<32xf32> to vector<1x32xf32>
    %18 = arith.subf %10, %17 : vector<1x32xf32>
    %cst_6 = arith.constant 0.000000e+00 : f32
    %19 = vector.broadcast %cst_6 : f32 to vector<1x32xf32>
    %20 = arith.maximumf %18, %19 : vector<1x32xf32>
    %cst_7 = arith.constant 0.000000e+00 : f32
    %21 = vector.broadcast %cst_7 : f32 to vector<1x32xf32>
    %22 = arith.subf %21, %20 : vector<1x32xf32>
    %23 = math.exp %22 : vector<1x32xf32>
    %cst_8 = arith.constant 1.000000e+00 : f32
    %24 = vector.broadcast %cst_8 : f32 to vector<1x32xf32>
    %25 = arith.subf %24, %23 : vector<1x32xf32>
    %26 = arith.mulf %25, %25 : vector<1x32xf32>
    %27 = arith.mulf %26, %20 : vector<1x32xf32>
    %c0_9 = arith.constant 0 : index
    %c0_10 = arith.constant 0 : index
    %28 = vector.load %arg3[%c0_9, %c0_10] : memref<1x32xf32, #tpu.memory_space<vmem>>, vector<1x32xf32>
    tpu.vector_store %arg3[%c0_9, %c0_10], %27 {strides = array<i32>} : memref<1x32xf32, #tpu.memory_space<vmem>>, vector<1x32xf32>,
    %29 = tpu.iota {dimensions = array<i32: 1>} : vector<1x32xi32>
    %c32_i32 = arith.constant 32 : i32
    %30 = arith.muli %arg0, %c32_i32 : i32
    %31 = vector.broadcast %30 : i32 to vector<1x32xi32>
    %32 = arith.addi %31, %29 : vector<1x32xi32>
    %c32_i32_11 = arith.constant 32 : i32
    %33 = vector.broadcast %c32_i32_11 : i32 to vector<1x32xi32>
    %34 = arith.cmpi slt, %32, %33 : vector<1x32xi32>
    %cst_12 = arith.constant 0.000000e+00 : f32
    %35 = vector.broadcast %cst_12 : f32 to vector<1x32xf32>
    %36 = arith.select %34, %27, %35 : vector<1x32xi1>, vector<1x32xf32>
    %37 = vector.shape_cast %36 : vector<1x32xf32> to vector<1x1x32xf32>
    %cst_13 = arith.constant dense<0.000000e+00> : vector<1xf32>
    %38 = vector.multi_reduction <add>, %37, %cst_13 [1, 2] : vector<1x1x32xf32> to vector<1xf32>
    %39 = vector.shape_cast %38 : vector<1xf32> to vector<1x1x1xf32>
    %40 = vector.extract %39[0, 0, 0] : f32 from vector<1x1x1xf32>
    %cst_14 = arith.constant 0.000000e+00 : f32
    %41 = vector.broadcast %cst_14 : f32 to vector<1x128xf32>
    %42 = vector.broadcast %40 : f32 to vector<1x128xf32>
    %43 = arith.addf %41, %42 : vector<1x128xf32>
    %c0_15 = arith.constant 0 : index
    %c0_16 = arith.constant 0 : index
    %44 = vector.load %arg4[%c0_15, %c0_16] : memref<1x128xf32, #tpu.memory_space<vmem>>, vector<1x128xf32>
    tpu.vector_store %arg4[%c0_15, %c0_16], %43 {strides = array<i32>} : memref<1x128xf32, #tpu.memory_space<vmem>>, vector<1x128xf32>,
    return
  }
  func.func @transform_0(%arg0: i32) -> (i32, i32) {
    %c0_i32 = arith.constant 0 : i32
    %c0_i32_0 = arith.constant 0 : i32
    return %c0_i32, %arg0 : i32, i32
  }
  func.func @transform_1(%arg0: i32) -> (i32, i32) {
    %c0_i32 = arith.constant 0 : i32
    %c0_i32_0 = arith.constant 0 : i32
    return %c0_i32, %arg0 : i32, i32
  }
  func.func @transform_2(%arg0: i32) -> (i32, i32) {
    %c0_i32 = arith.constant 0 : i32
    %c0_i32_0 = arith.constant 0 : i32
    return %c0_i32, %arg0 : i32, i32
  }
  func.func @transform_3(%arg0: i32) -> (i32, i32) {
    %c0_i32 = arith.constant 0 : i32
    %c0_i32_0 = arith.constant 0 : i32
    return %c0_i32, %arg0 : i32, i32
  }
}

</mosaic_0001>

<llo_original>
// kernel: focal_loss.1
$region0: #{focal_loss.1}
  #allocation0 [shape = 'u32[]', space=smem, size = 0x4, offset = 0x4, fixed_abs, tag = 'smem constant byte address 0x4 - core index']
  #allocation1 [shape = 'u32[144,128]{1,0:T(1,128)}', space=vmem, size = 0x12000, scoped, tag = 'internal scratch']
  %s0 = inlined_call_operand.hbm [shape: f32[8,32], index: 0, kind: input, shape index: {}]
  %s1 = inlined_call_operand.vmem [shape: s32[1,32], index: 1, kind: input, shape index: {}]
  %s2 = inlined_call_operand.hbm [shape: f32[1,32], index: 2, kind: output, shape index: {0}]
  %s3 = inlined_call_operand.vmem [shape: f32[1,128], index: 3, kind: output, shape index: {1}]
  %4 = xla_tuple %s2, %s3
  %s5 = sld [smem:[#allocation0]]
  $region30: #{focal_loss.1} parent=0
    _
  %s7 = ssub.s32 1, %s5
  %s8 = scalar_select 0, %s7, %s5
  $region1: #{focal_loss.1} parent=0
    #allocation2 [shape = 'u8[4096]{0}', space=vmem, size = 0x1000, scoped, tag = 'input window, operand 0, single buffered']
    #allocation3 [shape = 's32[1]{0}', space=sflag, size = 0x4, scoped, tag = 'scoped memory for focal_loss.1']
    #allocation4 [shape = 's32[1]{0}', space=sflag, size = 0x4, scoped, tag = 'scoped memory for focal_loss.1']
    #allocation5 [shape = 'u8[512]{0}', space=vmem, size = 0x400, scoped, tag = 'output window, operand 0, single buffered']
    %9 = vsyncpa [#allocation3], 0
    %10 = vsyncpa [#allocation4], 0
    // Predicated region
    $region2: #{focal_loss.1} parent=1 // pred_check
      _
    $region3: #{focal_loss.1} parent=1 // pred_check_branch
      %12 = sbr.rel (0) target = $region5
    $region4: #{focal_loss.1} parent=1 // pred_region
      %s14 = ssub.s32 128, 128
      %15 = vsyncadd [#allocation3], %s14
      %s17 = sshll.u32 [#allocation2], 4
      %s18 = int_to_ptr.vmem [resolvable:$true] %s17
      %20 = dma.hbm_to_vmem [thread:$0]  %s0, 128, %s18, [#allocation3]
    $region5: #{focal_loss.1} parent=1 // pred_fallthru
      _
    // Predicated region
    $region6: #{focal_loss.1} parent=1 // pred_check
      _
    $region7: #{focal_loss.1} parent=1 // pred_check_branch
      %22 = sbr.rel (0) target = $region9
    $region8: #{focal_loss.1} parent=1 // pred_region
      _
    $region9: #{focal_loss.1} parent=1 // pred_fallthru
      _
    // Predicated region
    $region10: #{focal_loss.1} parent=1 // pred_check
      _
    $region11: #{focal_loss.1} parent=1 // pred_check_branch
      %24 = sbr.rel (0) target = $region13
    $region12: #{focal_loss.1} parent=1 // pred_region
      %25 = dma.done [#allocation3], 128
    $region13: #{focal_loss.1} parent=1 // pred_fallthru
      _
    %v26 = vld [vmem:[#allocation2] sm:$0xff]
    %v27 = vld [vmem:[%s1] sm:$0x1]
    %vm28 = vcmask 261120
    %v29 = vsel %vm28, %v26, -inf
    %v30 = vrot.slane %v29, 4
    %v31 = vmax.f32 %v29, %v30
    %v32 = vrot.slane %v31, 2
    %v33 = vmax.f32 %v31, %v32
    %v34 = vrot.slane %v33, 1
    %v35 = vmax.f32 %v33, %v34
    %v36 = vsub.f32 %v26, %v35
    %v37 = vmul.f32 %v36, 1.442695
    %v38 = vpow.pop %v37
    %v39 = vsel %vm28, %v38, 0.0
    %v40 = vrot.slane %v39, 4
    %v41 = vadd.f32 %v39, %v40
    %v42 = vrot.slane %v41, 2
    %v43 = vadd.f32 %v41, %v42
    %v44 = vrot.slane %v43, 1
    %v45 = vadd.f32 %v43, %v44
    %v46 = vlog2.pop %v45
    %v47 = vmul.f32 %v46, 0.6931472
    %v48 = vadd.f32 %v35, %v47
    %v49 = vlaneseq
    %v50 = vshrl.u32 %v49, 7
    %v51 = vlaneseq
    %v52 = vshrl.u32 %v51, 7
    %v53 = vsub.s32 0, %v52
    %v54 = vrot.slane %v27, %v53
    %vm55 = vcmp.eq.s32.totalorder %v50, %v54
    %v56 = vsel %vm55, %v26, 0.0
    %v57 = vsel %vm28, %v56, 0.0
    %v58 = vrot.slane %v57, 4
    %v59 = vadd.f32 %v57, %v58
    %v60 = vrot.slane %v59, 2
    %v61 = vadd.f32 %v59, %v60
    %v62 = vrot.slane %v61, 1
    %v63 = vadd.f32 %v61, %v62
    %v64 = vsub.f32 %v48, %v63
    %v65 = vmax.f32 %v64, 0.0
    %v66 = vsub.f32 0.0, %v65
    %v67 = vmul.f32 %v66, 1.442695
    %v68 = vpow.pop %v67
    %v69 = vsub.f32 1.0, %v68
    %v70 = vmul.f32 %v69, %v69
    %v71 = vmul.f32 %v70, %v65
    %vm72 = vcmask 253952
    %73 = vst.msk [vmem:[#allocation5] sm:$0x1] %vm72, %v71
    %v74 = vlaneseq
    %v75 = vand.u32 %v74, 127
    %s76 = smul.u32 0, 32
    %v77 = vstv %s76
    %v78 = vadd.s32 %v77, %v75
    %vm79 = vcmp.lt.s32.totalorder %v78, 32
    %v80 = vsel %vm79, %v71, 0.0
    %v81 = vsel %vm72, %v80, 0.0
    %82 = vadd.xlane.f32.xlu0 %v81
    %v83 = vpop.xlane.xlu0 %82
    %v84 = vrot.slane %v83, 4
    %v85 = vadd.f32 %v83, %v84
    %v86 = vrot.slane %v85, 2
    %v87 = vadd.f32 %v85, %v86
    %v88 = vrot.slane %v87, 1
    %v89 = vadd.f32 %v87, %v88
    %s90 = vtos %v89
    %v91 = vstv %s90
    %v92 = vadd.f32 %v91, 0.0
    %93 = vst [vmem:[%s3] sm:$0x1] %v92
    // Predicated region
    $region14: #{focal_loss.1} parent=1 // pred_check
      _
    $region15: #{focal_loss.1} parent=1 // pred_check_branch
      %95 = sbr.rel (0) target = $region17
    $region16: #{focal_loss.1} parent=1 // pred_region
      %s97 = ssub.s32 16, 16
      %98 = vsyncadd [#allocation4], %s97
      %s100 = sshll.u32 [#allocation5], 4
      %s101 = int_to_ptr.vmem [resolvable:$true] %s100
      %103 = dma.vmem_to_hbm [thread:$0]  %s101, 16, %s2, [#allocation4]
    $region17: #{focal_loss.1} parent=1 // pred_fallthru
      _
    // Predicated region
    $region18: #{focal_loss.1} parent=1 // pred_check
      _
    $region19: #{focal_loss.1} parent=1 // pred_check_branch
      %105 = sbr.rel (0) target = $region21
    $region20: #{focal_loss.1} parent=1 // pred_region
      _
    $region21: #{focal_loss.1} parent=1 // pred_fallthru
      _
    // Predicated region
    $region22: #{focal_loss.1} parent=1 // pred_check
      _
    $region23: #{focal_loss.1} parent=1 // pred_check_branch
      %107 = sbr.rel (0) target = $region25
    $region24: #{focal_loss.1} parent=1 // pred_region
      %108 = dma.done [#allocation4], 16
    $region25: #{focal_loss.1} parent=1 // pred_fallthru
      _
    // Predicated region
    $region26: #{focal_loss.1} parent=1 // pred_check
      _
    $region27: #{focal_loss.1} parent=1 // pred_check_branch
      %110 = sbr.rel (0) target = $region29
    $region28: #{focal_loss.1} parent=1 // pred_region
      _
    $region29: #{focal_loss.1} parent=1 // pred_fallthru
      _
    %111 = vsyncpa [#allocation3], 1
    %112 = vsyncpa [#allocation4], 1

</llo_original>
